<compile_context>
chip_gen: v6e
topology: v6e:2x2x1
jax: 0.10.0
libtpu: 0.0.40
codegen_flags: <defaults>
</compile_context>

<pallas_src>
import functools

import jax
import jax.numpy as jnp
from jax.experimental import pallas as pl
from jax.experimental.pallas import tpu as pltpu


def _cdiv(a, b):
    return -(-a // b)


def _round_up(a, m):
    return _cdiv(a, m) * m


def _sublane_multiple(dtype):
    # Min second-minor tile: 8 rows for 4-byte, 16 for 2-byte, 32 for 1-byte.
    return max(8, 32 // jnp.dtype(dtype).itemsize)


def _tpu_generation_params():
    """Best-effort (n_cores, target_block_bytes, vmem_limit_bytes) per TPU gen."""
    kind = ""
    try:
        kind = (jax.devices()[0].device_kind or "").lower()
    except Exception:
        pass
    mib = 1024 * 1024
    if "v2" in kind or "v3" in kind:
        return 1, 1 * mib, 12 * mib            # small-VMEM legacy chips
    if "7" in kind:
        # v7x: 2 TensorCores/chip, 64 MiB VMEM per TC, ~3.2 TB/s HBM.
        return 2, 6 * mib, 48 * mib
    if "v6" in kind or "6e" in kind:
        # v6e: 1 TC, 128 MiB VMEM, ~1.4 TB/s HBM.
        return 1, 8 * mib, 72 * mib
    if "v5" in kind or "5e" in kind or "lite" in kind:
        # v5e: 1 TC, 128 MiB VMEM (default scoped limit is only 16 MiB).
        return 1, 4 * mib, 48 * mib
    return 1, 4 * mib, 48 * mib


def _ssq_kernel(v_ref, z_ref, out_ref, acc_ref, *, tile_rows, total_rows, ragged):
    # grid = (core, step); acc_ref is a single (8, width) f32 slab that
    # persists across the step axis (re-initialized per core slice).
    s = pl.program_id(1)

    @pl.when(s == 0)
    def _init():
        acc_ref[...] = jnp.zeros_like(acc_ref)

    diff = v_ref[...].astype(jnp.float32) - z_ref[...].astype(jnp.float32)

    if ragged:
        # Logical (unclamped) global row index of every row in this block;
        # rows at/past total_rows (padding of the partial last block, or
        # blocks whose index_map was clamped) contribute zero.
        block_idx = pl.program_id(0) * pl.num_programs(1) + s
        row_ids = block_idx * tile_rows + jax.lax.broadcasted_iota(
            jnp.int32, (tile_rows, 1), 0)
        diff = jnp.where(row_ids < total_rows, diff, 0.0)

    sq = diff * diff
    width = sq.shape[1]
    # Fold over sublane blocks: pure VPU vreg adds; keeps the accumulator a
    # single slab and the cross-lane (XLU) reduce out of the steady state.
    acc_ref[...] += sq.reshape(tile_rows // 8, 8, width).sum(axis=0)

    @pl.when(s == pl.num_programs(1) - 1)
    def _finalize():
        out_ref[0, 0] = jnp.sum(acc_ref[...])


@functools.partial(jax.jit, static_argnames=("lambda_v", "lambda_r", "n_cores"))
def self_v_loss(v, z, *, lambda_v, lambda_r, n_cores=None):
    assert v.shape == z.shape and v.ndim == 2
    n, d = v.shape
    itemsize = jnp.dtype(v.dtype).itemsize
    auto_cores, target_block_bytes, vmem_limit = _tpu_generation_params()
    if n_cores is None:
        n_cores = auto_cores

    # ---- lane-dense view ---------------------------------------------------
    # The loss is a full-array sum, so a row-major flatten is exact.  If D is
    # not lane-aligned but N*D is, view the inputs as (N*D/128, 128) so no
    # lanes / DMA bytes are wasted (contiguous reshape: no HBM copy).
    if d % 128 != 0 and (n * d) % 128 == 0:
        rows, width = (n * d) // 128, 128
        v = v.reshape(rows, width)
        z = z.reshape(rows, width)
    else:
        rows, width = n, d
        # TODO(synk): when D % 128 != 0 and N*D % 128 != 0 we stream full-D
        # (lane-masked) blocks; a tail-padded flat view would recover the
        # remaining lane efficiency at the cost of one small copy.

    # ---- tile sizing: byte budget only, no row cap ---------------------------
    sub = _sublane_multiple(v.dtype)
    row_bytes = max(width * itemsize, 1)
    tile_rows = max(sub, (target_block_bytes // row_bytes) // sub * sub)
    rows_per_core = _cdiv(rows, n_cores)
    tile_rows = min(tile_rows, _round_up(rows_per_core, sub))
    steps = _cdiv(rows_per_core, tile_rows)
    padded_rows = n_cores * steps * tile_rows
    ragged = padded_rows != rows          # partial last block and/or clamped blocks
    last_block = max(_cdiv(rows, tile_rows) - 1, 0)
    # TODO(synk): for extremely wide rows (width*itemsize >> block budget) add a
    # second grid axis over the feature dim instead of a single giant block.

    def idx_map(c, s):
        # Clamp so every issued DMA starts in bounds; the kernel masks the
        # duplicated / padded rows of clamped and partial blocks to zero.
        return (jnp.minimum(c * steps + s, last_block), 0)

    in_spec = pl.BlockSpec((tile_rows, width), idx_map)

    cost = pl.CostEstimate(
        flops=3 * n * d,                      # sub, mul, add per element
        transcendentals=0,
        bytes_accessed=2 * n * d * itemsize + n_cores * 4,
    )

    partials = pl.pallas_call(
        functools.partial(
            _ssq_kernel, tile_rows=tile_rows, total_rows=rows, ragged=ragged),
        out_shape=jax.ShapeDtypeStruct((n_cores, 1), jnp.float32),
        grid_spec=pltpu.PrefetchScalarGridSpec(
            num_scalar_prefetch=0,
            grid=(n_cores, steps),
            in_specs=[in_spec, in_spec],
            out_specs=pl.BlockSpec((1, 1), lambda c, s: (c, 0),
                                   memory_space=pltpu.MemorySpace.SMEM),
            scratch_shapes=[pltpu.VMEM((8, width), jnp.float32)],
        ),
        compiler_params=pltpu.CompilerParams(
            # core axis parallel (both TCs on v7x stream HBM), reduction axis
            # arbitrary (accumulator lives across it).
            dimension_semantics=("parallel", "arbitrary"),
            vmem_limit_bytes=vmem_limit,
        ),
        cost_estimate=cost,
    )(v, z)

    # glue: combine per-core partials, mean over batch, lambda_v/lambda_r scale.
    scale = jnp.float32(1.0 * lambda_v / lambda_r)
    return (jnp.sum(partials) / jnp.float32(n)) * scale


def _reference(v, z, lambda_v, lambda_r):
    v32 = v.astype(jnp.float32)
    z32 = z.astype(jnp.float32)
    return (1.0 * lambda_v / lambda_r) * jnp.mean(
        jnp.sum(jnp.square(v32 - z32), axis=1))


if __name__ == "__main__":
    key = jax.random.PRNGKey(0)
    lambda_v, lambda_r = 10.0, 2.0

    cases = [
        # (N, D, dtype): exercise aligned, row-masked, lane-dense-flattened
        # and bf16 sublane-rounding paths — all small shapes.
        (64, 128, jnp.float32),   # fully tile-aligned
        (50, 96, jnp.float32),    # ragged N, D < 128 (full-extent lane block)
        (48, 96, jnp.float32),    # N*D % 128 == 0 -> lane-dense flatten + mask
        (40, 256, jnp.bfloat16),  # bf16 -> 16-row sublane rounding + mask
    ]
    for i, (N, D, dt) in enumerate(cases):
        key, k1, k2 = jax.random.split(key, 3)
        v = jax.random.normal(k1, (N, D), dtype=jnp.float32).astype(dt)
        z = jax.random.normal(k2, (N, D), dtype=jnp.float32).astype(dt)
        out = jax.block_until_ready(
            self_v_loss(v, z, lambda_v=lambda_v, lambda_r=lambda_r))
        ref = _reference(v, z, lambda_v, lambda_r)
        assert jnp.allclose(out, ref, rtol=1e-4, atol=1e-4), (i, out, ref)

    print("KERNEL_OK")
</pallas_src>

<mosaic_0001>
module attributes {stable_mosaic.version = 11 : i64} {
  func.func @_ssq_kernel(%arg0: i32, %arg1: i32, %arg2: memref<64x128xf32, #tpu.memory_space<vmem>>, %arg3: memref<64x128xf32, #tpu.memory_space<vmem>>, %arg4: memref<1x1xf32, #tpu.memory_space<smem>>, %arg5: memref<8x128xf32, #tpu.memory_space<vmem>>) attributes {dimension_semantics = [#tpu.dimension_semantics<parallel>, #tpu.dimension_semantics<arbitrary>], iteration_bounds = array<i64: 1, 1>, scalar_prefetch = 0 : i64, scratch_operands = 1 : i64, tpu.core_type = #tpu.core_type<tc>, window_params = [{transform_indices = @transform_0, window_bounds = array<i64: 64, 128>}, {transform_indices = @transform_1, window_bounds = array<i64: 64, 128>}, {transform_indices = @transform_2, window_bounds = array<i64: 1, 1>}]} {
    %c0_i32 = arith.constant 0 : i32
    %0 = arith.cmpi eq, %arg1, %c0_i32 : i32
    %1 = arith.extui %0 : i1 to i32
    %c0_i32_0 = arith.constant 0 : i32
    %2 = arith.cmpi ne, %1, %c0_i32_0 : i32
    scf.if %2 {
      %cst_10 = arith.constant 0.000000e+00 : f32
      %15 = vector.broadcast %cst_10 : f32 to vector<8x128xf32>
      %c0_11 = arith.constant 0 : index
      %c0_12 = arith.constant 0 : index
      %16 = vector.load %arg5[%c0_11, %c0_12] : memref<8x128xf32, #tpu.memory_space<vmem>>, vector<8x128xf32>
      tpu.vector_store %arg5[%c0_11, %c0_12], %15 {strides = array<i32>} : memref<8x128xf32, #tpu.memory_space<vmem>>, vector<8x128xf32>,
    } else {
    }
    %c0 = arith.constant 0 : index
    %c0_1 = arith.constant 0 : index
    %3 = vector.load %arg2[%c0, %c0_1] : memref<64x128xf32, #tpu.memory_space<vmem>>, vector<64x128xf32>
    %c0_2 = arith.constant 0 : index
    %c0_3 = arith.constant 0 : index
    %4 = vector.load %arg3[%c0_2, %c0_3] : memref<64x128xf32, #tpu.memory_space<vmem>>, vector<64x128xf32>
    %5 = arith.subf %3, %4 : vector<64x128xf32>
    %6 = arith.mulf %5, %5 : vector<64x128xf32>
    %c0_4 = arith.constant 0 : index
    %c0_5 = arith.constant 0 : index
    %7 = vector.load %arg5[%c0_4, %c0_5] : memref<8x128xf32, #tpu.memory_space<vmem>>, vector<8x128xf32>
    %8 = vector.shape_cast %6 : vector<64x128xf32> to vector<8x8x128xf32>
    %cst = arith.constant dense<0.000000e+00> : vector<8x128xf32>
    %9 = vector.multi_reduction <add>, %8, %cst [0] : vector<8x8x128xf32> to vector<8x128xf32>
    %10 = arith.addf %7, %9 : vector<8x128xf32>
    %c0_6 = arith.constant 0 : index
    %c0_7 = arith.constant 0 : index
    %11 = vector.load %arg5[%c0_6, %c0_7] : memref<8x128xf32, #tpu.memory_space<vmem>>, vector<8x128xf32>
    tpu.vector_store %arg5[%c0_6, %c0_7], %10 {strides = array<i32>} : memref<8x128xf32, #tpu.memory_space<vmem>>, vector<8x128xf32>,
    %c0_i32_8 = arith.constant 0 : i32
    %12 = arith.cmpi eq, %arg1, %c0_i32_8 : i32
    %13 = arith.extui %12 : i1 to i32
    %c0_i32_9 = arith.constant 0 : i32
    %14 = arith.cmpi ne, %13, %c0_i32_9 : i32
    scf.if %14 {
      %c0_10 = arith.constant 0 : index
      %c0_11 = arith.constant 0 : index
      %15 = vector.load %arg5[%c0_10, %c0_11] : memref<8x128xf32, #tpu.memory_space<vmem>>, vector<8x128xf32>
      %16 = vector.shape_cast %15 : vector<8x128xf32> to vector<1x8x128xf32>
      %cst_12 = arith.constant dense<0.000000e+00> : vector<1xf32>
      %17 = vector.multi_reduction <add>, %16, %cst_12 [1, 2] : vector<1x8x128xf32> to vector<1xf32>
      %18 = vector.shape_cast %17 : vector<1xf32> to vector<1x1x1xf32>
      %19 = vector.extract %18[0, 0, 0] : f32 from vector<1x1x1xf32>
      %c0_13 = arith.constant 0 : index
      %c0_14 = arith.constant 0 : index
      %20 = memref.load %arg4[%c0_13, %c0_14] : memref<1x1xf32, #tpu.memory_space<smem>>
      memref.store %19, %arg4[%c0_13, %c0_14] : memref<1x1xf32, #tpu.memory_space<smem>>
    } else {
    }
    return
  }
  func.func @transform_0(%arg0: i32, %arg1: i32) -> (i32, i32) {
    %c1_i32 = arith.constant 1 : i32
    %0 = arith.muli %arg0, %c1_i32 : i32
    %1 = arith.addi %0, %arg1 : i32
    %c0_i32 = arith.constant 0 : i32
    %2 = arith.minsi %1, %c0_i32 : i32
    %c0_i32_0 = arith.constant 0 : i32
    %c0_i32_1 = arith.constant 0 : i32
    return %2, %c0_i32_0 : i32, i32
  }
  func.func @transform_1(%arg0: i32, %arg1: i32) -> (i32, i32) {
    %c1_i32 = arith.constant 1 : i32
    %0 = arith.muli %arg0, %c1_i32 : i32
    %1 = arith.addi %0, %arg1 : i32
    %c0_i32 = arith.constant 0 : i32
    %2 = arith.minsi %1, %c0_i32 : i32
    %c0_i32_0 = arith.constant 0 : i32
    %c0_i32_1 = arith.constant 0 : i32
    return %2, %c0_i32_0 : i32, i32
  }
  func.func @transform_2(%arg0: i32, %arg1: i32) -> (i32, i32) {
    %c0_i32 = arith.constant 0 : i32
    %c0_i32_0 = arith.constant 0 : i32
    return %arg0, %c0_i32 : i32, i32
  }
}

</mosaic_0001>

<llo_original>
// kernel: self_v_loss.1
$region0: #{self_v_loss.1}
  #allocation0 [shape = 'u32[]', space=smem, size = 0x4, offset = 0x4, fixed_abs, tag = 'smem constant byte address 0x4 - core index']
  #allocation1 [shape = 'u32[144,128]{1,0:T(1,128)}', space=vmem, size = 0x12000, scoped, tag = 'internal scratch']
  #allocation2 [shape = 'f32[8,128]{1,0:T(8,128)}', space=vmem, size = 0x1000, scoped, tag = 'scratch operand']
  %s0 = inlined_call_operand.hbm [shape: f32[64,128], index: 0, kind: input, shape index: {}]
  %s1 = inlined_call_operand.hbm [shape: f32[64,128], index: 1, kind: input, shape index: {}]
  %s2 = inlined_call_operand.hbm [shape: f32[1,1], index: 2, kind: output, shape index: {}]
  %s3 = sld [smem:[#allocation0]]
  $region34: #{self_v_loss.1} parent=0
    _
  %s5 = ssub.s32 1, %s3
  %s6 = scalar_select 0, %s5, %s3
  $region1: #{self_v_loss.1} parent=0
    #allocation3 [shape = 'u8[32768]{0}', space=vmem, size = 0x8000, scoped, tag = 'input window, operand 0, single buffered']
    #allocation4 [shape = 's32[1]{0}', space=sflag, size = 0x4, scoped, tag = 'scoped memory for self_v_loss.1']
    #allocation5 [shape = 's32[1]{0}', space=sflag, size = 0x4, scoped, tag = 'scoped memory for self_v_loss.1']
    #allocation6 [shape = 'u8[32768]{0}', space=vmem, size = 0x8000, scoped, tag = 'input window, operand 1, single buffered']
    #allocation7 [shape = 's32[1]{0}', space=sflag, size = 0x4, scoped, tag = 'scoped memory for self_v_loss.1']
    #allocation8 [shape = 'u8[512]{0}', space=smem, size = 0x200, scoped, tag = 'output window, operand 0, single buffered']
    %7 = vsyncpa [#allocation4], 0
    %8 = vsyncpa [#allocation7], 0
    %9 = vsyncpa [#allocation5], 0
    // Predicated region
    $region2: #{self_v_loss.1} parent=1 // pred_check
      _
    $region3: #{self_v_loss.1} parent=1 // pred_check_branch
      %11 = sbr.rel (0) target = $region5
    $region4: #{self_v_loss.1} parent=1 // pred_region
      %s12 = sadd.s32 0, 0
      %p13 = scmp.lt.s32.totalorder %s12, 0
      %s14 = scalar_select %p13, %s12, 0
      %s15 = smul.u32 8, %s14
      %s17 = ssub.s32 1024, 1024
      %18 = vsyncadd [#allocation4], %s17
      %s19 = smul.addr %s15, 128
      %s20 = scalar_lea.hbm %s0, %s19
      %s21 = sshll.u32 [#allocation3], 4
      %s22 = int_to_ptr.vmem [resolvable:$true] %s21
      %27 = dma.hbm_to_vmem [thread:$0]  %s20, 1024, %s22, [#allocation4], 128, 128, 8
    $region5: #{self_v_loss.1} parent=1 // pred_fallthru
      _
    // Predicated region
    $region6: #{self_v_loss.1} parent=1 // pred_check
      _
    $region7: #{self_v_loss.1} parent=1 // pred_check_branch
      %29 = sbr.rel (0) target = $region9
    $region8: #{self_v_loss.1} parent=1 // pred_region
      %s30 = sadd.s32 0, 0
      %p31 = scmp.lt.s32.totalorder %s30, 0
      %s32 = scalar_select %p31, %s30, 0
      %s33 = smul.u32 8, %s32
      %s35 = ssub.s32 1024, 1024
      %36 = vsyncadd [#allocation7], %s35
      %s37 = smul.addr %s33, 128
      %s38 = scalar_lea.hbm %s1, %s37
      %s39 = sshll.u32 [#allocation6], 4
      %s40 = int_to_ptr.vmem [resolvable:$true] %s39
      %45 = dma.hbm_to_vmem [thread:$0]  %s38, 1024, %s40, [#allocation7], 128, 128, 8
    $region9: #{self_v_loss.1} parent=1 // pred_fallthru
      _
    // Predicated region
    $region10: #{self_v_loss.1} parent=1 // pred_check
      _
    $region11: #{self_v_loss.1} parent=1 // pred_check_branch
      %47 = sbr.rel (0) target = $region13
    $region12: #{self_v_loss.1} parent=1 // pred_region
      %48 = dma.done [#allocation4], 1024
    $region13: #{self_v_loss.1} parent=1 // pred_fallthru
      _
    // Predicated region
    $region14: #{self_v_loss.1} parent=1 // pred_check
      _
    $region15: #{self_v_loss.1} parent=1 // pred_check_branch
      %50 = sbr.rel (0) target = $region17
    $region16: #{self_v_loss.1} parent=1 // pred_region
      %51 = dma.done [#allocation7], 1024
    $region17: #{self_v_loss.1} parent=1 // pred_fallthru
      _
    %s52 = sadd.s32 0, 0
    %p53 = scmp.lt.s32.totalorder %s52, 0
    %s54 = scalar_select %p53, %s52, 0
    %s55 = smul.u32 8, %s54
    %s56 = sadd.s32 0, 0
    %p57 = scmp.lt.s32.totalorder %s56, 0
    %s58 = scalar_select %p57, %s56, 0
    %s59 = smul.u32 8, %s58
    %p60 = scmp.eq.s32.totalorder 0, 0
    // Predicated region
    $region18: #{self_v_loss.1} parent=1 // pred_check
      %p61 = pneg %p60
    $region19: #{self_v_loss.1} parent=1 // pred_check_branch
      %63 = sbr.rel (%p61) target = $region21
    $region20: #{self_v_loss.1} parent=1 // pred_region
      %64 = vst [vmem:[#allocation2] sm:$0xff] 0.0
    $region21: #{self_v_loss.1} parent=1 // pred_fallthru
      _
    %v65 = vld [vmem:[#allocation3] sm:$0xff]
    %v66 = vld [vmem:[#allocation3 + $0x8] sm:$0xff]
    %v67 = vld [vmem:[#allocation3 + $0x10] sm:$0xff]
    %v68 = vld [vmem:[#allocation3 + $0x18] sm:$0xff]
    %v69 = vld [vmem:[#allocation3 + $0x20] sm:$0xff]
    %v70 = vld [vmem:[#allocation3 + $0x28] sm:$0xff]
    %v71 = vld [vmem:[#allocation3 + $0x30] sm:$0xff]
    %v72 = vld [vmem:[#allocation3 + $0x38] sm:$0xff]
    %v73 = vld [vmem:[#allocation6] sm:$0xff]
    %v74 = vld [vmem:[#allocation6 + $0x8] sm:$0xff]
    %v75 = vld [vmem:[#allocation6 + $0x10] sm:$0xff]
    %v76 = vld [vmem:[#allocation6 + $0x18] sm:$0xff]
    %v77 = vld [vmem:[#allocation6 + $0x20] sm:$0xff]
    %v78 = vld [vmem:[#allocation6 + $0x28] sm:$0xff]
    %v79 = vld [vmem:[#allocation6 + $0x30] sm:$0xff]
    %v80 = vld [vmem:[#allocation6 + $0x38] sm:$0xff]
    %v81 = vsub.f32 %v65, %v73
    %v82 = vsub.f32 %v66, %v74
    %v83 = vsub.f32 %v67, %v75
    %v84 = vsub.f32 %v68, %v76
    %v85 = vsub.f32 %v69, %v77
    %v86 = vsub.f32 %v70, %v78
    %v87 = vsub.f32 %v71, %v79
    %v88 = vsub.f32 %v72, %v80
    %v89 = vmul.f32 %v81, %v81
    %v90 = vmul.f32 %v82, %v82
    %v91 = vmul.f32 %v83, %v83
    %v92 = vmul.f32 %v84, %v84
    %v93 = vmul.f32 %v85, %v85
    %v94 = vmul.f32 %v86, %v86
    %v95 = vmul.f32 %v87, %v87
    %v96 = vmul.f32 %v88, %v88
    %v97 = vld [vmem:[#allocation2] sm:$0xff]
    %v98 = vadd.f32 %v89, %v90
    %v99 = vadd.f32 %v98, %v91
    %v100 = vadd.f32 %v99, %v92
    %v101 = vadd.f32 %v100, %v93
    %v102 = vadd.f32 %v101, %v94
    %v103 = vadd.f32 %v102, %v95
    %v104 = vadd.f32 %v103, %v96
    %v105 = vadd.f32 %v97, %v104
    %106 = vst [vmem:[#allocation2] sm:$0xff] %v105
    // Predicated region
    $region22: #{self_v_loss.1} parent=1 // pred_check
      %p107 = pneg %p60
    $region23: #{self_v_loss.1} parent=1 // pred_check_branch
      %109 = sbr.rel (%p107) target = $region25
    $region24: #{self_v_loss.1} parent=1 // pred_region
      %v110 = vld [vmem:[#allocation2] sm:$0xff]
      %111 = vadd.xlane.f32.xlu0 %v110
      %v112 = vpop.xlane.xlu0 %111
      %v113 = vrot.slane %v112, 4
      %v114 = vadd.f32 %v112, %v113
      %v115 = vrot.slane %v114, 2
      %v116 = vadd.f32 %v114, %v115
      %v117 = vrot.slane %v116, 1
      %v118 = vadd.f32 %v116, %v117
      %s119 = vtos %v118
      %s120 = scalar_lea.smem [#allocation8], 0
      %121 = sst [smem:[%s120]] %s119
    $region25: #{self_v_loss.1} parent=1 // pred_fallthru
      _
    // Predicated region
    $region26: #{self_v_loss.1} parent=1 // pred_check
      _
    $region27: #{self_v_loss.1} parent=1 // pred_check_branch
      %123 = sbr.rel (0) target = $region29
    $region28: #{self_v_loss.1} parent=1 // pred_region
      %s125 = ssub.s32 16, 16
      %126 = vsyncadd [#allocation5], %s125
      %129 = dma.smem_to_hbm [#allocation8], 16, %s2, [#allocation5]
    $region29: #{self_v_loss.1} parent=1 // pred_fallthru
      _
    // Predicated region
    $region30: #{self_v_loss.1} parent=1 // pred_check
      _
    $region31: #{self_v_loss.1} parent=1 // pred_check_branch
      %131 = sbr.rel (0) target = $region33
    $region32: #{self_v_loss.1} parent=1 // pred_region
      %132 = dma.done [#allocation5], 16
    $region33: #{self_v_loss.1} parent=1 // pred_fallthru
      _
    %133 = sfence
    %134 = vsyncpa [#allocation4], 1
    %135 = vsyncpa [#allocation7], 1
    %136 = vsyncpa [#allocation5], 1

</llo_original>
